<compile_context>
chip_gen: v7x
topology: tpu7x:2x2x1
jax: 0.10.0
libtpu: 0.0.40
codegen_flags: <defaults>
</compile_context>

<pallas_src>
import functools

import jax
import jax.numpy as jnp
from jax.experimental import pallas as pl
from jax.experimental.pallas import tpu as pltpu


def _cdiv(a, b):
    return -(-a // b)


def _vmem_capacity_bytes():
    """Physical VMEM per TensorCore, with per-generation fallbacks."""
    try:
        return int(pltpu.get_tpu_info().vmem_capacity_bytes)
    except Exception:
        pass
    try:
        kind = jax.devices()[0].device_kind.lower()
    except Exception:
        kind = ""
    if "7" in kind:                      # v7x: 64 MiB per TensorCore
        return 64 * 1024 * 1024
    if "v5" in kind or "v6" in kind:     # v5e / v6e: 128 MiB
        return 128 * 1024 * 1024
    return 64 * 1024 * 1024              # unknown: be conservative


def _se_mlp(y, w1_ref, b1_ref, w2_ref, b2_ref, use_mxu):
    """y: (M, C) f32 -> sigmoid(relu(y @ W1 + b1) @ W2 + b2): (M, C) f32."""
    w1 = w1_ref[...].astype(jnp.float32)
    b1 = b1_ref[...].astype(jnp.float32)
    w2 = w2_ref[...].astype(jnp.float32)
    b2 = b2_ref[...].astype(jnp.float32)
    if use_mxu:
        # Large C*Ch: MXU matmul keeps the footprint at O(M*Ch)/O(M*C).
        h = jnp.dot(y, w1, preferred_element_type=jnp.float32) + b1
        h = jnp.maximum(h, 0.0)
        s = jnp.dot(h, w2, preferred_element_type=jnp.float32) + b2
    else:
        # Tiny MLP: VPU broadcast-multiply + reduce.  The (M, C, Ch)
        # intermediate is only taken when C*Ch is small, so it stays cheap.
        h = jnp.sum(y[:, :, None] * w1[None, :, :], axis=1) + b1
        h = jnp.maximum(h, 0.0)
        s = jnp.sum(h[:, :, None] * w2[None, :, :], axis=1) + b2
    return jax.nn.sigmoid(s)


def _se_fused_kernel(x_ref, w1_ref, b1_ref, w2_ref, b2_ref, o_ref, *,
                     inv_hw, use_mxu):
    # x_ref / o_ref: (Bt, C, HW); weights are VMEM-resident across grid steps.
    x = x_ref[...]
    # Squeeze: global average pool over the lane (spatial) axis, f32 accum.
    y = jnp.sum(x, axis=-1, dtype=jnp.float32) * inv_hw            # (Bt, C)
    s = _se_mlp(y, w1_ref, b1_ref, w2_ref, b2_ref, use_mxu)        # (Bt, C)
    # Excite: multiply in f32 and cast the *product* to the output dtype.
    o_ref[...] = (x.astype(jnp.float32) * s[:, :, None]).astype(o_ref.dtype)


def _se_pool_kernel(x_ref, w1_ref, b1_ref, w2_ref, b2_ref, s_ref, acc_ref, *,
                    inv_hw, hw, t_hw, use_mxu):
    # x_ref: (1, C, t_hw); s_ref: (1, C, 1) f32; acc_ref: (1, C) f32 scratch.
    h_idx = pl.program_id(1)

    @pl.when(h_idx == 0)
    def _():
        acc_ref[...] = jnp.zeros_like(acc_ref)

    x = x_ref[...]
    if hw % t_hw != 0:
        # Ragged spatial tail: OOB block reads have unspecified contents and
        # would corrupt the pooled sum, so mask lanes past the true extent.
        pos = jax.lax.broadcasted_iota(jnp.int32, x.shape, 2) + h_idx * t_hw
        x = jnp.where(pos < hw, x, jnp.zeros_like(x))
    acc_ref[...] += jnp.sum(x, axis=-1, dtype=jnp.float32)

    @pl.when(h_idx == pl.num_programs(1) - 1)
    def _():
        y = acc_ref[...] * inv_hw                                   # (1, C)
        s = _se_mlp(y, w1_ref, b1_ref, w2_ref, b2_ref, use_mxu)     # (1, C)
        s_ref[...] = s[:, :, None]                                  # (1, C, 1)


def _se_scale_kernel(s_ref, x_ref, o_ref):
    # s_ref: (1, C, 1) f32; x_ref / o_ref: (1, C, t_hw).
    o_ref[...] = (x_ref[...].astype(jnp.float32) * s_ref[...]).astype(o_ref.dtype)


def se_layer(x_nchw, w1, b1, w2, b2, *, force_two_pass=False, hw_block=None):
    """SELayer forward.  x_nchw: (B, C, H, W); w1: (C, Ch); w2: (Ch, C)."""
    B, C, H, W = x_nchw.shape
    HW = H * W
    Ch = w1.shape[1]
    x = x_nchw.reshape(B, C, HW)          # metadata-only reshape, no HBM copy
    itemsize = x.dtype.itemsize

    b1_2d = b1.reshape(1, Ch)
    b2_2d = b2.reshape(1, C)

    # VMEM budget: near-physical scoped limit minus resident (double-buffered)
    # weights and a small fixed margin.  Streaming x/out blocks account for
    # 2 input + 2 output double-buffered copies.
    vmem_cap = _vmem_capacity_bytes()
    vmem_limit = min((vmem_cap * 7) // 8, 112 * 1024 * 1024)
    weight_bytes = 2 * sum(int(a.size) * a.dtype.itemsize
                           for a in (w1, b1_2d, w2, b2_2d))
    stream_budget = max(0, vmem_limit - weight_bytes - 2 * 1024 * 1024)

    bytes_per_row = C * HW * itemsize            # one batch row of x (or out)
    max_bt = stream_budget // (4 * bytes_per_row) if bytes_per_row else B

    # VPU MLP path materializes a (bt, C, Ch) f32 temp -> only for tiny MLPs.
    use_mxu = (C * Ch) >= 4096
    mlp_flops = 2 * B * (C * Ch + Ch * C)

    if max_bt >= 1 and not force_two_pass:
        # ------- fused single-pass path: x streams through VMEM once -------
        bt = int(min(B, max_bt))
        steps = _cdiv(B, bt)
        if B > 1 and steps == 1:
            # Always give the megacore (v7x: 2 TCs) at least two batch blocks.
            bt = _cdiv(B, 2)
            steps = _cdiv(B, bt)
        if steps > 1 and steps % 2 == 1:
            # Prefer an even number of blocks so both TensorCores stay busy,
            # as long as the streaming block stays reasonably large.
            nbt = _cdiv(B, steps + 1)
            if _cdiv(B, nbt) % 2 == 0 and nbt * bytes_per_row >= (1 << 20):
                bt = nbt
                steps = _cdiv(B, bt)

        kernel = functools.partial(_se_fused_kernel, inv_hw=1.0 / HW,
                                   use_mxu=use_mxu)
        out = pl.pallas_call(
            kernel,
            out_shape=jax.ShapeDtypeStruct((B, C, HW), x.dtype),
            grid_spec=pltpu.PrefetchScalarGridSpec(
                num_scalar_prefetch=0,
                grid=(steps,),
                in_specs=[
                    # NOTE: if B % bt != 0 the last block reads past B.  SE
                    # mixes nothing across rows, so garbage rows only produce
                    # garbage outputs whose stores are masked off.
                    pl.BlockSpec((bt, C, HW), lambda i: (i, 0, 0)),
                    pl.BlockSpec((C, Ch), lambda i: (0, 0)),   # W1 resident
                    pl.BlockSpec((1, Ch), lambda i: (0, 0)),   # b1 resident
                    pl.BlockSpec((Ch, C), lambda i: (0, 0)),   # W2 resident
                    pl.BlockSpec((1, C), lambda i: (0, 0)),    # b2 resident
                ],
                out_specs=pl.BlockSpec((bt, C, HW), lambda i: (i, 0, 0)),
            ),
            compiler_params=pltpu.CompilerParams(
                dimension_semantics=("parallel",),
                vmem_limit_bytes=int(vmem_limit)),
            cost_estimate=pl.CostEstimate(
                flops=2 * B * C * HW + mlp_flops,
                transcendentals=B * C,
                bytes_accessed=2 * B * C * HW * itemsize + weight_bytes),
        )(x, w1, b1_2d, w2, b2_2d)
        return out.reshape(B, C, H, W)

    # ------------- two-pass fallback: spatial axis is tiled -------------
    if hw_block is None:
        t = stream_budget // (4 * C * itemsize)        # lanes per block
        t = max(128, (t // 128) * 128)
        t_hw = min(HW, t)
    else:
        t_hw = min(HW, max(128, (hw_block // 128) * 128)) if HW >= 128 else HW
    n_hw = _cdiv(HW, t_hw)

    pool_kernel = functools.partial(_se_pool_kernel, inv_hw=1.0 / HW,
                                    hw=HW, t_hw=t_hw, use_mxu=use_mxu)
    scale = pl.pallas_call(
        pool_kernel,
        out_shape=jax.ShapeDtypeStruct((B, C, 1), jnp.float32),
        grid_spec=pltpu.PrefetchScalarGridSpec(
            num_scalar_prefetch=0,
            grid=(B, n_hw),
            in_specs=[
                pl.BlockSpec((1, C, t_hw), lambda b, h: (b, 0, h)),
                pl.BlockSpec((C, Ch), lambda b, h: (0, 0)),
                pl.BlockSpec((1, Ch), lambda b, h: (0, 0)),
                pl.BlockSpec((Ch, C), lambda b, h: (0, 0)),
                pl.BlockSpec((1, C), lambda b, h: (0, 0)),
            ],
            out_specs=pl.BlockSpec((1, C, 1), lambda b, h: (b, 0, 0)),
            scratch_shapes=[pltpu.VMEM((1, C), jnp.float32)],
        ),
        compiler_params=pltpu.CompilerParams(
            dimension_semantics=("parallel", "arbitrary"),
            vmem_limit_bytes=int(vmem_limit)),
        cost_estimate=pl.CostEstimate(
            flops=2 * B * C * HW + mlp_flops,
            transcendentals=B * C,
            bytes_accessed=B * C * HW * itemsize + weight_bytes),
    )(x, w1, b1_2d, w2, b2_2d)

    out = pl.pallas_call(
        _se_scale_kernel,
        out_shape=jax.ShapeDtypeStruct((B, C, HW), x.dtype),
        grid_spec=pltpu.PrefetchScalarGridSpec(
            num_scalar_prefetch=0,
            grid=(B, n_hw),
            in_specs=[
                pl.BlockSpec((1, C, 1), lambda b, h: (b, 0, 0)),
                pl.BlockSpec((1, C, t_hw), lambda b, h: (b, 0, h)),
            ],
            out_specs=pl.BlockSpec((1, C, t_hw), lambda b, h: (b, 0, h)),
        ),
        compiler_params=pltpu.CompilerParams(
            dimension_semantics=("parallel", "parallel"),
            vmem_limit_bytes=int(vmem_limit)),
        cost_estimate=pl.CostEstimate(
            flops=B * C * HW,
            transcendentals=0,
            bytes_accessed=2 * B * C * HW * itemsize + B * C * 4),
    )(scale, x)
    return out.reshape(B, C, H, W)


def _reference(x, w1, b1, w2, b2):
    # Pure-JAX reference mirroring the PyTorch module.
    y = jnp.mean(x, axis=(2, 3))                                  # (B, C)
    h = jnp.maximum(y @ w1 + b1, 0.0)
    s = jax.nn.sigmoid(h @ w2 + b2)                               # (B, C)
    return x * s[:, :, None, None]


if __name__ == "__main__":
    key = jax.random.PRNGKey(0)

    def init_params(C, reduction, k):
        Ch = max(1, C // reduction)
        k1, k2, k3, k4 = jax.random.split(k, 4)
        # nn.Linear weights stored as (in, out): kernel computes y @ W + b.
        w1 = jax.random.normal(k1, (C, Ch), dtype=jnp.float32) * 0.1
        b1 = jax.random.normal(k2, (Ch,), dtype=jnp.float32) * 0.1
        w2 = jax.random.normal(k3, (Ch, C), dtype=jnp.float32) * 0.1
        b2 = jax.random.normal(k4, (C,), dtype=jnp.float32) * 0.1
        return w1, b1, w2, b2

    # Test 1: fused single-pass path with HW NOT a multiple of 128
    # (exercises the no-pad, full-HW lane block).
    kx, kw, key = jax.random.split(key, 3)
    B, C, H, W = 2, 16, 13, 13
    x = jax.random.normal(kx, (B, C, H, W), dtype=jnp.float32)
    w1, b1, w2, b2 = init_params(C, 8, kw)
    out = jax.block_until_ready(se_layer(x, w1, b1, w2, b2))
    ref = _reference(x, w1, b1, w2, b2)
    assert out.shape == (B, C, H, W)
    assert jnp.allclose(out, ref, atol=1e-5, rtol=1e-5), "fused path mismatch"

    # Test 2: two-pass spatial-tiled fallback (forced at small shapes),
    # with a ragged 128-lane tail to exercise the masked reduction.
    kx, kw, key = jax.random.split(key, 3)
    B, C, H, W = 2, 16, 20, 20
    x = jax.random.normal(kx, (B, C, H, W), dtype=jnp.float32)
    w1, b1, w2, b2 = init_params(C, 8, kw)
    out = jax.block_until_ready(
        se_layer(x, w1, b1, w2, b2, force_two_pass=True, hw_block=128))
    ref = _reference(x, w1, b1, w2, b2)
    assert jnp.allclose(out, ref, atol=1e-5, rtol=1e-5), "two-pass mismatch"

    print("KERNEL_OK")
</pallas_src>

<mosaic_0001>
module attributes {stable_mosaic.version = 11 : i64} {
  func.func @_se_fused_kernel(%arg0: i32, %arg1: memref<1x16x169xf32, #tpu.memory_space<vmem>>, %arg2: memref<16x2xf32, #tpu.memory_space<vmem>>, %arg3: memref<1x2xf32, #tpu.memory_space<vmem>>, %arg4: memref<2x16xf32, #tpu.memory_space<vmem>>, %arg5: memref<1x16xf32, #tpu.memory_space<vmem>>, %arg6: memref<1x16x169xf32, #tpu.memory_space<vmem>>) attributes {dimension_semantics = [#tpu.dimension_semantics<parallel>], iteration_bounds = array<i64: 2>, scalar_prefetch = 0 : i64, scratch_operands = 0 : i64, tpu.core_type = #tpu.core_type<tc>, window_params = [{transform_indices = @transform_0, window_bounds = array<i64: 1, 16, 169>}, {pipeline_mode = #tpu.pipeline_mode<synchronous>, transform_indices = @transform_1, window_bounds = array<i64: 16, 2>}, {pipeline_mode = #tpu.pipeline_mode<synchronous>, transform_indices = @transform_2, window_bounds = array<i64: 1, 2>}, {pipeline_mode = #tpu.pipeline_mode<synchronous>, transform_indices = @transform_3, window_bounds = array<i64: 2, 16>}, {pipeline_mode = #tpu.pipeline_mode<synchronous>, transform_indices = @transform_4, window_bounds = array<i64: 1, 16>}, {transform_indices = @transform_5, window_bounds = array<i64: 1, 16, 169>}]} {
    %c0 = arith.constant 0 : index
    %c0_0 = arith.constant 0 : index
    %c0_1 = arith.constant 0 : index
    %0 = vector.load %arg1[%c0, %c0_0, %c0_1] : memref<1x16x169xf32, #tpu.memory_space<vmem>>, vector<1x16x169xf32>
    %cst = arith.constant dense<0.000000e+00> : vector<1x16xf32>
    %1 = vector.multi_reduction <add>, %0, %cst [2] : vector<1x16x169xf32> to vector<1x16xf32>
    %cst_2 = arith.constant 5.917160e-03 : f32
    %2 = vector.broadcast %cst_2 : f32 to vector<1x16xf32>
    %3 = arith.mulf %1, %2 : vector<1x16xf32>
    %c0_3 = arith.constant 0 : index
    %c0_4 = arith.constant 0 : index
    %4 = vector.load %arg2[%c0_3, %c0_4] : memref<16x2xf32, #tpu.memory_space<vmem>>, vector<16x2xf32>
    %c0_5 = arith.constant 0 : index
    %c0_6 = arith.constant 0 : index
    %5 = vector.load %arg3[%c0_5, %c0_6] : memref<1x2xf32, #tpu.memory_space<vmem>>, vector<1x2xf32>
    %c0_7 = arith.constant 0 : index
    %c0_8 = arith.constant 0 : index
    %6 = vector.load %arg4[%c0_7, %c0_8] : memref<2x16xf32, #tpu.memory_space<vmem>>, vector<2x16xf32>
    %c0_9 = arith.constant 0 : index
    %c0_10 = arith.constant 0 : index
    %7 = vector.load %arg5[%c0_9, %c0_10] : memref<1x16xf32, #tpu.memory_space<vmem>>, vector<1x16xf32>
    %8 = vector.shape_cast %3 : vector<1x16xf32> to vector<1x16x1xf32>
    %9 = vector.shape_cast %4 : vector<16x2xf32> to vector<1x16x2xf32>
    %10 = vector.broadcast %8 : vector<1x16x1xf32> to vector<1x16x2xf32>
    %11 = arith.mulf %10, %9 : vector<1x16x2xf32>
    %cst_11 = arith.constant dense<0.000000e+00> : vector<1x2xf32>
    %12 = vector.multi_reduction <add>, %11, %cst_11 [1] : vector<1x16x2xf32> to vector<1x2xf32>
    %13 = arith.addf %12, %5 : vector<1x2xf32>
    %cst_12 = arith.constant 0.000000e+00 : f32
    %14 = vector.broadcast %cst_12 : f32 to vector<1x2xf32>
    %15 = arith.maximumf %13, %14 : vector<1x2xf32>
    %16 = vector.shape_cast %15 : vector<1x2xf32> to vector<1x2x1xf32>
    %17 = vector.shape_cast %6 : vector<2x16xf32> to vector<1x2x16xf32>
    %18 = vector.broadcast %16 : vector<1x2x1xf32> to vector<1x2x16xf32>
    %19 = arith.mulf %18, %17 : vector<1x2x16xf32>
    %cst_13 = arith.constant dense<0.000000e+00> : vector<1x16xf32>
    %20 = vector.multi_reduction <add>, %19, %cst_13 [1] : vector<1x2x16xf32> to vector<1x16xf32>
    %21 = arith.addf %20, %7 : vector<1x16xf32>
    %22 = arith.negf %21 : vector<1x16xf32>
    %23 = math.exp %22 : vector<1x16xf32>
    %cst_14 = arith.constant 1.000000e+00 : f32
    %24 = vector.broadcast %cst_14 : f32 to vector<1x16xf32>
    %25 = arith.addf %24, %23 : vector<1x16xf32>
    %26 = arith.divf %24, %25 : vector<1x16xf32>
    %27 = vector.shape_cast %26 : vector<1x16xf32> to vector<1x16x1xf32>
    %28 = vector.broadcast %27 : vector<1x16x1xf32> to vector<1x16x169xf32>
    %29 = arith.mulf %0, %28 : vector<1x16x169xf32>
    %c0_15 = arith.constant 0 : index
    %c0_16 = arith.constant 0 : index
    %c0_17 = arith.constant 0 : index
    %30 = vector.load %arg6[%c0_15, %c0_16, %c0_17] : memref<1x16x169xf32, #tpu.memory_space<vmem>>, vector<1x16x169xf32>
    tpu.vector_store %arg6[%c0_15, %c0_16, %c0_17], %29 {strides = array<i32>} : memref<1x16x169xf32, #tpu.memory_space<vmem>>, vector<1x16x169xf32>,
    return
  }
  func.func @transform_0(%arg0: i32) -> (i32, i32, i32) {
    %c0_i32 = arith.constant 0 : i32
    %c0_i32_0 = arith.constant 0 : i32
    %c0_i32_1 = arith.constant 0 : i32
    return %arg0, %c0_i32, %c0_i32_0 : i32, i32, i32
  }
  func.func @transform_1(%arg0: i32) -> (i32, i32) {
    %c0_i32 = arith.constant 0 : i32
    %c0_i32_0 = arith.constant 0 : i32
    %c0_i32_1 = arith.constant 0 : i32
    return %c0_i32, %c0_i32_0 : i32, i32
  }
  func.func @transform_2(%arg0: i32) -> (i32, i32) {
    %c0_i32 = arith.constant 0 : i32
    %c0_i32_0 = arith.constant 0 : i32
    %c0_i32_1 = arith.constant 0 : i32
    return %c0_i32, %c0_i32_0 : i32, i32
  }
  func.func @transform_3(%arg0: i32) -> (i32, i32) {
    %c0_i32 = arith.constant 0 : i32
    %c0_i32_0 = arith.constant 0 : i32
    %c0_i32_1 = arith.constant 0 : i32
    return %c0_i32, %c0_i32_0 : i32, i32
  }
  func.func @transform_4(%arg0: i32) -> (i32, i32) {
    %c0_i32 = arith.constant 0 : i32
    %c0_i32_0 = arith.constant 0 : i32
    %c0_i32_1 = arith.constant 0 : i32
    return %c0_i32, %c0_i32_0 : i32, i32
  }
  func.func @transform_5(%arg0: i32) -> (i32, i32, i32) {
    %c0_i32 = arith.constant 0 : i32
    %c0_i32_0 = arith.constant 0 : i32
    %c0_i32_1 = arith.constant 0 : i32
    return %arg0, %c0_i32, %c0_i32_0 : i32, i32, i32
  }
}

</mosaic_0001>

<llo_original>
// kernel: tpu_custom_call.1
$region0: #{tpu_custom_call.1}
  #allocation0 [shape = 'u32[]', space=smem, size = 0x4, offset = 0x4, fixed_abs, tag = 'smem constant byte address 0x4 - core index']
  #allocation1 [shape = 'u32[144,128]{1,0:T(1,128)}', space=vmem, size = 0x12000, scoped, tag = 'internal scratch']
  %s0 = inlined_call_operand.hbm [shape: f32[2,16,169], index: 0, kind: input, shape index: {}]
  %s1 = inlined_call_operand.vmem [shape: f32[16,2], index: 1, kind: input, shape index: {}]
  %s2 = inlined_call_operand.vmem [shape: f32[1,2], index: 2, kind: input, shape index: {}]
  %s3 = inlined_call_operand.vmem [shape: f32[2,16], index: 3, kind: input, shape index: {}]
  %s4 = inlined_call_operand.vmem [shape: f32[1,16], index: 4, kind: input, shape index: {}]
  %s5 = inlined_call_operand.hbm [shape: f32[2,16,169], index: 5, kind: output, shape index: {}]
  %s6 = sld [smem:[#allocation0]]
  $region57: #{tpu_custom_call.1} parent=0
    _
  %s8 = ssub.s32 1, %s6
  %s9 = scalar_select 0, %s8, %s6
  $region1: #{tpu_custom_call.1} parent=0
    #allocation2 [shape = 'u8[32768]{0}', space=vmem, size = 0x8000, scoped, tag = 'input window, operand 0']
    #allocation3 [shape = 's32[2]{0}', space=sflag, size = 0x8, scoped, tag = 'scoped memory for tpu_custom_call.1']
    #allocation4 [shape = 's32[2]{0}', space=sflag, size = 0x8, scoped, tag = 'scoped memory for tpu_custom_call.1']
    #allocation5 [shape = 'u8[32768]{0}', space=vmem, size = 0x8000, scoped, tag = 'output window, operand 0']
    %10 = vsyncpa [#allocation3], 0
    %s11 = scalar_lea.sflag [#allocation3], 1
    %12 = vsyncpa %s11, 0
    %13 = vsyncpa [#allocation4], 0
    %s14 = scalar_lea.sflag [#allocation4], 1
    %15 = vsyncpa %s14, 0
    loop: start=0, step=1, limit=4
    $region2: #{tpu_custom_call.1} parent=1 // loop_pre_header
      _
    $region3: #{tpu_custom_call.1} parent=1 // loop_header
      %s17 = sphi 0, %s21
      %p18 = scmp.ge.s32.totalorder %s17, 4
      %s27 = sphi 0, %s29
      %s30 = sphi 0, %s27
      %s31 = sphi 0, %s30
      %s47 = sphi 0, %s31
      %s51 = sphi 0, %s51
      %s53 = sphi 0, %s51
      %s54 = sphi 0, %s53
      %s68 = sphi 0, %s54
      %s72 = sphi 0, %s72
      %s74 = sphi 0, %s72
      %s75 = sphi 0, %s74
      %s89 = sphi 0, %s75
      %s93 = sphi 0, %s93
      %s95 = sphi 0, %s93
      %s96 = sphi 0, %s95
      %s110 = sphi 0, %s96
      %s114 = sphi 0, %s114
      %s116 = sphi 0, %s114
      %s117 = sphi 0, %s116
      %s131 = sphi 0, %s117
      %s137 = sphi 0, %s139
      %s140 = sphi 0, %s137
      %s141 = sphi 0, %s140
      %s157 = sphi 0, %s141
    $region4: #{tpu_custom_call.1} parent=1 // loop_header_branch
      %20 = sbr.rel (%p18) target = $region8
    $region5: #{tpu_custom_call.1} parent=1 // loop_body
      %s22 = ssub.s32 %s17, 1
      %s23 = ssub.s32 %s17, 2
      %s24 = sadd.s32 %s17, 1
      %s25 = ssub.s32 %s17, %s24
      %p26 = scmp.eq.s32.totalorder %s25, 0
      %s28 = sadd.s32 %s27, 1
      %s29 = scalar_select %p26, %s27, %s28
      %p32 = pneg %p26
      %p33 = scmp.eq.s32.totalorder %s17, 1
      %p34 = por %p32, %p33
      %p35 = scmp.ne.s32.totalorder %s27, %s30
      %p36 = scmp.eq.s32.totalorder %s17, 0
      %p37 = por %p35, %p36
      %p38 = scmp.ne.s32.totalorder %s27, %s30
      %p39 = scmp.eq.s32.totalorder %s22, 1
      %p40 = por %p38, %p39
      %p41 = scmp.ne.s32.totalorder %s30, %s31
      %p42 = scmp.eq.s32.totalorder %s22, 0
      %p43 = por %p41, %p42
      %p44 = scmp.ne.s32.totalorder %s30, %s31
      %p45 = scmp.eq.s32.totalorder %s23, 1
      %p46 = por %p44, %p45
      %p48 = scmp.ne.s32.totalorder %s31, %s47
      %p49 = scmp.eq.s32.totalorder %s23, 0
      %p50 = por %p48, %p49
      %s52 = sadd.s32 %s51, 1
      %p55 = scmp.eq.s32.totalorder %s17, 1
      %p56 = scmp.ne.s32.totalorder %s51, %s53
      %p57 = scmp.eq.s32.totalorder %s17, 0
      %p58 = por %p56, %p57
      %p59 = scmp.ne.s32.totalorder %s51, %s53
      %p60 = scmp.eq.s32.totalorder %s22, 1
      %p61 = por %p59, %p60
      %p62 = scmp.ne.s32.totalorder %s53, %s54
      %p63 = scmp.eq.s32.totalorder %s22, 0
      %p64 = por %p62, %p63
      %p65 = scmp.ne.s32.totalorder %s53, %s54
      %p66 = scmp.eq.s32.totalorder %s23, 1
      %p67 = por %p65, %p66
      %p69 = scmp.ne.s32.totalorder %s54, %s68
      %p70 = scmp.eq.s32.totalorder %s23, 0
      %p71 = por %p69, %p70
      %s73 = sadd.s32 %s72, 1
      %p76 = scmp.eq.s32.totalorder %s17, 1
      %p77 = scmp.ne.s32.totalorder %s72, %s74
      %p78 = scmp.eq.s32.totalorder %s17, 0
      %p79 = por %p77, %p78
      %p80 = scmp.ne.s32.totalorder %s72, %s74
      %p81 = scmp.eq.s32.totalorder %s22, 1
      %p82 = por %p80, %p81
      %p83 = scmp.ne.s32.totalorder %s74, %s75
      %p84 = scmp.eq.s32.totalorder %s22, 0
      %p85 = por %p83, %p84
      %p86 = scmp.ne.s32.totalorder %s74, %s75
      %p87 = scmp.eq.s32.totalorder %s23, 1
      %p88 = por %p86, %p87
      %p90 = scmp.ne.s32.totalorder %s75, %s89
      %p91 = scmp.eq.s32.totalorder %s23, 0
      %p92 = por %p90, %p91
      %s94 = sadd.s32 %s93, 1
      %p97 = scmp.eq.s32.totalorder %s17, 1
      %p98 = scmp.ne.s32.totalorder %s93, %s95
      %p99 = scmp.eq.s32.totalorder %s17, 0
      %p100 = por %p98, %p99
      %p101 = scmp.ne.s32.totalorder %s93, %s95
      %p102 = scmp.eq.s32.totalorder %s22, 1
      %p103 = por %p101, %p102
      %p104 = scmp.ne.s32.totalorder %s95, %s96
      %p105 = scmp.eq.s32.totalorder %s22, 0
      %p106 = por %p104, %p105
      %p107 = scmp.ne.s32.totalorder %s95, %s96
      %p108 = scmp.eq.s32.totalorder %s23, 1
      %p109 = por %p107, %p108
      %p111 = scmp.ne.s32.totalorder %s96, %s110
      %p112 = scmp.eq.s32.totalorder %s23, 0
      %p113 = por %p111, %p112
      %s115 = sadd.s32 %s114, 1
      %p118 = scmp.eq.s32.totalorder %s17, 1
      %p119 = scmp.ne.s32.totalorder %s114, %s116
      %p120 = scmp.eq.s32.totalorder %s17, 0
      %p121 = por %p119, %p120
      %p122 = scmp.ne.s32.totalorder %s114, %s116
      %p123 = scmp.eq.s32.totalorder %s22, 1
      %p124 = por %p122, %p123
      %p125 = scmp.ne.s32.totalorder %s116, %s117
      %p126 = scmp.eq.s32.totalorder %s22, 0
      %p127 = por %p125, %p126
      %p128 = scmp.ne.s32.totalorder %s116, %s117
      %p129 = scmp.eq.s32.totalorder %s23, 1
      %p130 = por %p128, %p129
      %p132 = scmp.ne.s32.totalorder %s117, %s131
      %p133 = scmp.eq.s32.totalorder %s23, 0
      %p134 = por %p132, %p133
      %s135 = ssub.s32 %s17, %s24
      %p136 = scmp.eq.s32.totalorder %s135, 0
      %s138 = sadd.s32 %s137, 1
      %s139 = scalar_select %p136, %s137, %s138
      %p142 = pneg %p136
      %p143 = scmp.eq.s32.totalorder %s17, 1
      %p144 = por %p142, %p143
      %p145 = scmp.ne.s32.totalorder %s137, %s140
      %p146 = scmp.eq.s32.totalorder %s17, 0
      %p147 = por %p145, %p146
      %p148 = scmp.ne.s32.totalorder %s137, %s140
      %p149 = scmp.eq.s32.totalorder %s22, 1
      %p150 = por %p148, %p149
      %p151 = scmp.ne.s32.totalorder %s140, %s141
      %p152 = scmp.eq.s32.totalorder %s22, 0
      %p153 = por %p151, %p152
      %p154 = scmp.ne.s32.totalorder %s140, %s141
      %p155 = scmp.eq.s32.totalorder %s23, 1
      %p156 = por %p154, %p155
      %p158 = scmp.ne.s32.totalorder %s141, %s157
      %p159 = scmp.eq.s32.totalorder %s23, 0
      %p160 = por %p158, %p159
      %p161 = scmp.le.s32.totalorder 1, %s17
      %p162 = scmp.lt.s32.totalorder %s17, 3
      %p163 = pnand %p161, %p162
      %p164 = pneg %p163
      // Predicated region
      $region9: #{tpu_custom_call.1} parent=5 // pred_check
        _
      $region10: #{tpu_custom_call.1} parent=5 // pred_check_branch
        %166 = sbr.rel (%p163) target = $region12
      $region11: #{tpu_custom_call.1} parent=5 // pred_region
        %s167 = ssub.s32 %s17, 1
        // Predicated region
        $region13: #{tpu_custom_call.1} parent=11 // pred_check
          %p168 = pneg %p64
        $region14: #{tpu_custom_call.1} parent=11 // pred_check_branch
          %170 = sbr.rel (%p168) target = $region16
        $region15: #{tpu_custom_call.1} parent=11 // pred_region
          _
        $region16: #{tpu_custom_call.1} parent=11 // pred_fallthru
          _
        // Predicated region
        $region17: #{tpu_custom_call.1} parent=11 // pred_check
          %p171 = pneg %p85
        $region18: #{tpu_custom_call.1} parent=11 // pred_check_branch
          %173 = sbr.rel (%p171) target = $region20
        $region19: #{tpu_custom_call.1} parent=11 // pred_region
          _
        $region20: #{tpu_custom_call.1} parent=11 // pred_fallthru
          _
        // Predicated region
        $region21: #{tpu_custom_call.1} parent=11 // pred_check
          %p174 = pneg %p106
        $region22: #{tpu_custom_call.1} parent=11 // pred_check_branch
          %176 = sbr.rel (%p174) target = $region24
        $region23: #{tpu_custom_call.1} parent=11 // pred_region
          _
        $region24: #{tpu_custom_call.1} parent=11 // pred_fallthru
          _
        // Predicated region
        $region25: #{tpu_custom_call.1} parent=11 // pred_check
          %p177 = pneg %p127
        $region26: #{tpu_custom_call.1} parent=11 // pred_check_branch
          %179 = sbr.rel (%p177) target = $region28
        $region27: #{tpu_custom_call.1} parent=11 // pred_region
          _
        $region28: #{tpu_custom_call.1} parent=11 // pred_fallthru
          _
      $region12: #{tpu_custom_call.1} parent=5 // pred_fallthru
        _
      %p180 = scmp.lt.s32.totalorder %s17, 2
      // Predicated region
      $region29: #{tpu_custom_call.1} parent=5 // pred_check
        %p181 = pneg %p180
      $region30: #{tpu_custom_call.1} parent=5 // pred_check_branch
        %183 = sbr.rel (%p181) target = $region32
      $region31: #{tpu_custom_call.1} parent=5 // pred_region
        // Predicated region
        $region33: #{tpu_custom_call.1} parent=31 // pred_check
          %p184 = pneg %p37
        $region34: #{tpu_custom_call.1} parent=31 // pred_check_branch
          %186 = sbr.rel (%p184) target = $region36
        $region35: #{tpu_custom_call.1} parent=31 // pred_region
          %s187 = sand.u32 %s27, 1
          %s188 = scalar_lea.sflag [#allocation3], %s187
          %s189 = sand.u32 %s27, 1
          %s190 = smul.addr %s189, 32
          %s191 = scalar_lea.vmem [#allocation2], %s190
          %s193 = ssub.s32 512, 512
          %194 = vsyncadd %s188, %s193
          %s195 = smul.addr %s17, 4
          %s196 = smul.addr %s195, 128
          %s197 = scalar_lea.hbm %s0, %s196
          %s198 = sshll.u32 %s191, 4
          %s199 = int_to_ptr.vmem [resolvable:$true] %s198
          %204 = dma.hbm_to_vmem [thread:$0]  %s197, 512, %s199, %s188, 256, 256, 16
        $region36: #{tpu_custom_call.1} parent=31 // pred_fallthru
          _
      $region32: #{tpu_custom_call.1} parent=5 // pred_fallthru
        _
      %p205 = scmp.le.s32.totalorder 1, %s17
      %p206 = scmp.lt.s32.totalorder %s17, 3
      %p207 = pnand %p205, %p206
      %p208 = pneg %p207
      // Predicated region
      $region37: #{tpu_custom_call.1} parent=5 // pred_check
        _
      $region38: #{tpu_custom_call.1} parent=5 // pred_check_branch
        %210 = sbr.rel (%p207) target = $region40
      $region39: #{tpu_custom_call.1} parent=5 // pred_region
        %s211 = ssub.s32 %s17, 1
        %s212 = sand.u32 %s30, 1
        %s213 = scalar_lea.sflag [#allocation3], %s212
        %s214 = sand.u32 %s30, 1
        %s215 = smul.addr %s214, 32
        %s216 = scalar_lea.vmem [#allocation2], %s215
        // Predicated region
        $region41: #{tpu_custom_call.1} parent=39 // pred_check
          %p217 = pneg %p43
        $region42: #{tpu_custom_call.1} parent=39 // pred_check_branch
          %219 = sbr.rel (%p217) target = $region44
        $region43: #{tpu_custom_call.1} parent=39 // pred_region
          %220 = dma.done %s213, 512
        $region44: #{tpu_custom_call.1} parent=39 // pred_fallthru
          _
        %s221 = sand.u32 %s30, 1
        %s222 = scalar_lea.sflag [#allocation3], %s221
        %s223 = sand.u32 %s30, 1
        %s224 = smul.addr %s223, 32
        %s225 = scalar_lea.vmem [#allocation2], %s224
        %p226 = pneg %p43
        %p227 = pneg %p40
        %p228 = pneg %p64
        %p229 = pneg %p61
        %p230 = pneg %p85
        %p231 = pneg %p82
        %p232 = pneg %p106
        %p233 = pneg %p103
        %p234 = pneg %p127
        %p235 = pneg %p124
        %p236 = pneg %p153
        %p237 = pneg %p150
        %s238 = sand.u32 %s140, 1
        %s239 = scalar_lea.sflag [#allocation4], %s238
        %s240 = sand.u32 %s140, 1
        %s241 = smul.addr %s240, 32
        %s242 = scalar_lea.vmem [#allocation5], %s241
        %v243 = vld [vmem:[%s216] sm:$0xff]
        %v244 = vld [vmem:[%s216 + $0x8] sm:$0xff]
        %v245 = vld [vmem:[%s216 + $0x10] sm:$0xff]
        %v246 = vld [vmem:[%s216 + $0x18] sm:$0xff]
        %vm247 = vcmask 334848
        %v248 = vsel %vm247, %v244, 0.0
        %v249 = vadd.f32 %v243, %v248
        %250 = vadd.xlane.f32.xlu0 %v249
        %v251 = vpop.xlane.xlu0 %250
        %v252 = vsel %vm247, %v246, 0.0
        %v253 = vadd.f32 %v245, %v252
        %254 = vadd.xlane.f32.xlu0 %v253
        %v255 = vpop.xlane.xlu0 %254
        %v256 = vmul.f32 %v251, 0.00591716
        %v257 = vmul.f32 %v255, 0.00591716
        %v258 = vld [vmem:[%s1] sm:$0xff]
        %v259 = vld [vmem:[%s1 + $0x8] sm:$0xff]
        %v260 = vld [vmem:[%s2] sm:$0x1]
        %v261 = vld [vmem:[%s3] sm:$0x3]
        %v262 = vld [vmem:[%s4] sm:$0x1]
        %v263 = vmul.f32 %v256, %v258
        %v264 = vmul.f32 %v257, %v259
        %vm265 = vcmask 15360
        %v266 = vsel %vm265, %v263, 0.0
        %v267 = vsel %vm265, %v264, 0.0
        %v268 = vadd.f32 %v266, %v267
        %v269 = vrot.slane %v268, 4
        %v270 = vadd.f32 %v268, %v269
        %v271 = vrot.slane %v270, 2
        %v272 = vadd.f32 %v270, %v271
        %v273 = vrot.slane %v272, 1
        %v274 = vadd.f32 %v272, %v273
        %v275 = vadd.f32 %v274, %v260
        %v276 = vmax.f32 %v275, 0.0
        %v277 = vlaneseq
        %v278 = vshrl.u32 %v277, 7
        %v279 = vsub.s32 0, %v278
        %v280 = vrot.slane %v276, %v279
        %282 = vbcast.lane.b32.xlu0 %v280, 256
        %v283 = vpop.permute.xlu0 %282
        %v284 = vmul.f32 %v283, %v261
        %vm285 = vcmask 123904
        %v286 = vsel %vm285, %v284, 0.0
        %v287 = vrot.slane %v286, 4
        %v288 = vadd.f32 %v286, %v287
        %v289 = vrot.slane %v288, 2
        %v290 = vadd.f32 %v288, %v289
        %v291 = vrot.slane %v290, 1
        %v292 = vadd.f32 %v290, %v291
        %v293 = vadd.f32 %v292, %v262
        %v294 = vxor.u32 %v293, 2147483648
        %v295 = vmul.f32 %v294, 1.442695
        %v296 = vpow.pop %v295
        %v297 = vadd.f32 %v296, 1.0
        %v298 = vrcp.pop %v297
        %v299 = vmul.f32 1.0, %v298
        %v300 = vlaneseq
        %v301 = vshrl.u32 %v300, 7
        %v302 = vsub.s32 0, %v301
        %v303 = vrot.slane %v299, %v302
        %305 = vbcast.lane.b32.xlu0 %v303, 256
        %v306 = vpop.permute.xlu0 %305
        %s308 = sor.u32 256, 8
        %309 = vbcast.lane.b32.xlu0 %v303, %s308
        %v310 = vpop.permute.xlu0 %309
        %v311 = vmul.f32 %v243, %v306
        %v312 = vmul.f32 %v244, %v306
        %v313 = vmul.f32 %v245, %v310
        %v314 = vmul.f32 %v246, %v310
        %315 = vst [vmem:[%s242] sm:$0xff] %v311
        %316 = vst.msk [vmem:[%s242 + $0x8] sm:$0xff] %vm247, %v312
        %317 = vst [vmem:[%s242 + $0x10] sm:$0xff] %v313
        %318 = vst.msk [vmem:[%s242 + $0x18] sm:$0xff] %vm247, %v314
        %s319 = sand.u32 %s140, 1
        %s320 = scalar_lea.sflag [#allocation4], %s319
        %s321 = sand.u32 %s140, 1
        %s322 = smul.addr %s321, 32
        %s323 = scalar_lea.vmem [#allocation5], %s322
        // Predicated region
        $region45: #{tpu_custom_call.1} parent=39 // pred_check
          %p324 = pneg %p150
        $region46: #{tpu_custom_call.1} parent=39 // pred_check_branch
          %326 = sbr.rel (%p324) target = $region48
        $region47: #{tpu_custom_call.1} parent=39 // pred_region
          %s328 = ssub.s32 512, 512
          %329 = vsyncadd %s320, %s328
          %s330 = smul.addr %s22, 4
          %s331 = smul.addr %s330, 128
          %s332 = scalar_lea.hbm %s5, %s331
          %s333 = sshll.u32 %s323, 4
          %s334 = int_to_ptr.vmem [resolvable:$true] %s333
          %339 = dma.vmem_to_hbm [thread:$0]  %s334, 512, %s332, %s320, 256, 256, 16
        $region48: #{tpu_custom_call.1} parent=39 // pred_fallthru
          _
      $region40: #{tpu_custom_call.1} parent=5 // pred_fallthru
        _
      %p340 = scmp.le.s32.totalorder 2, %s17
      // Predicated region
      $region49: #{tpu_custom_call.1} parent=5 // pred_check
        %p341 = pneg %p340
      $region50: #{tpu_custom_call.1} parent=5 // pred_check_branch
        %343 = sbr.rel (%p341) target = $region52
      $region51: #{tpu_custom_call.1} parent=5 // pred_region
        %s344 = ssub.s32 %s17, 2
        // Predicated region
        $region53: #{tpu_custom_call.1} parent=51 // pred_check
          %p345 = pneg %p156
        $region54: #{tpu_custom_call.1} parent=51 // pred_check_branch
          %347 = sbr.rel (%p345) target = $region56
        $region55: #{tpu_custom_call.1} parent=51 // pred_region
          %s348 = sand.u32 %s141, 1
          %s349 = scalar_lea.sflag [#allocation4], %s348
          %s350 = sand.u32 %s141, 1
          %s351 = smul.addr %s350, 32
          %s352 = scalar_lea.vmem [#allocation5], %s351
          %353 = dma.done %s349, 512
        $region56: #{tpu_custom_call.1} parent=51 // pred_fallthru
          _
      $region52: #{tpu_custom_call.1} parent=5 // pred_fallthru
        _
    $region6: #{tpu_custom_call.1} parent=1 // loop_footer
      %s21 = sadd.s32 1, %s17
    $region7: #{tpu_custom_call.1} parent=1 // loop_footer_branch
      %16 = sbr.rel target = $region3
    $region8: #{tpu_custom_call.1} parent=1 // loop_exit
      _
    %354 = vsyncpa [#allocation3], 1
    %s355 = scalar_lea.sflag [#allocation3], 1
    %356 = vsyncpa %s355, 1
    %357 = vsyncpa [#allocation4], 1
    %s358 = scalar_lea.sflag [#allocation4], 1
    %359 = vsyncpa %s358, 1

</llo_original>
